<compile_context>
chip_gen: v6e
topology: v6e:2x2x1
jax: 0.10.0
libtpu: 0.0.40
codegen_flags: <defaults>
</compile_context>

<pallas_src>
import functools

import jax
import jax.numpy as jnp
from jax.experimental import pallas as pl
from jax.experimental.pallas import tpu as pltpu


def _crossen_kernel(sim_ref, diag_ref, out_ref, *, tm, n):
    """One row block: -log_softmax(x)[r, r] summed over valid rows of the block."""
    i = pl.program_id(0)

    # (TM, N) row block, math in f32 (input may be bf16 in HBM).
    x = sim_ref[...].astype(jnp.float32)

    # Numerically-stable log-sum-exp per row; logpt itself is never materialized.
    row_max = jnp.max(x, axis=-1, keepdims=True)                          # (TM, 1)
    lse = jnp.log(jnp.sum(jnp.exp(x - row_max), axis=-1, keepdims=True))  # (TM, 1)

    # Diagonal of the global matrix for these rows lives in the (TM, TM) window at
    # block index (i, i); extract it with a small (TM, TM) mask only.
    d = diag_ref[...].astype(jnp.float32)                                 # (TM, TM)
    rr = jax.lax.broadcasted_iota(jnp.int32, (tm, tm), 0)
    cc = jax.lax.broadcasted_iota(jnp.int32, (tm, tm), 1)
    diag = jnp.sum(jnp.where(rr == cc, d, 0.0), axis=-1, keepdims=True)   # (TM, 1)

    # -logpt[r, r] = row_max + lse - x[r, r]
    contrib = row_max + lse - diag                                        # (TM, 1)

    # Mask padded tail rows (global row index >= N); also neutralizes any NaN/Inf
    # produced by garbage data in the padded region.
    global_row = i * tm + jax.lax.broadcasted_iota(jnp.int32, (tm, 1), 0)
    contrib = jnp.where(global_row < n, contrib, 0.0)

    block_sum = jnp.sum(contrib)

    # Lane-dense (8, 128) partial tile: every element holds block_sum / 1024, so the
    # wrapper's jnp.sum over all tiles recovers the total exactly (power-of-two scaling).
    out_ref[...] = jnp.broadcast_to(block_sum * (1.0 / 1024.0), (8, 128)).astype(
        jnp.float32
    )


def cross_en(sim_matrix: jax.Array, *, block_rows=None,
             max_block_bytes: int = 4 * 1024 * 1024) -> jax.Array:
    """Pallas equivalent of CrossEn.forward(sim_matrix) -> scalar f32 loss."""
    n, m = sim_matrix.shape
    if n != m:
        raise ValueError("CrossEn expects a square similarity matrix")

    esz = jnp.dtype(sim_matrix.dtype).itemsize

    # Row-tile selection: full matrix if it is small, otherwise the largest multiple of
    # 128 rows whose (TM, N) block fits the per-buffer budget (double-buffered by Pallas).
    if block_rows is not None:
        tm = min(int(block_rows), n)
    elif n * n * esz <= max_block_bytes:
        tm = n
    else:
        tm = max(128, ((max_block_bytes // (n * esz)) // 128) * 128)
        tm = min(tm, n)
    if tm < n and tm % 128 != 0:
        raise ValueError("row tile must be a multiple of 128 when it does not cover N")

    num_blocks = pl.cdiv(n, tm)

    kernel = functools.partial(_crossen_kernel, tm=tm, n=n)

    partials = pl.pallas_call(
        kernel,
        out_shape=jax.ShapeDtypeStruct((num_blocks * 8, 128), jnp.float32),
        grid_spec=pltpu.PrefetchScalarGridSpec(
            num_scalar_prefetch=0,
            grid=(num_blocks,),
            in_specs=[
                # Full-width row block: softmax axis (last dim) stays on the lane axis.
                pl.BlockSpec((tm, n), lambda i: (i, 0)),
                # Small diagonal window of the same matrix at block index (i, i).
                pl.BlockSpec((tm, tm), lambda i: (i, i)),
            ],
            out_specs=pl.BlockSpec((8, 128), lambda i: (i, 0)),
        ),
        compiler_params=pltpu.CompilerParams(
            dimension_semantics=("parallel",),
            vmem_limit_bytes=32 * 1024 * 1024,
        ),
        cost_estimate=pl.CostEstimate(
            flops=5 * n * n,
            transcendentals=n * n,
            bytes_accessed=n * n * esz + num_blocks * tm * tm * esz
            + num_blocks * 8 * 128 * 4,
        ),
    )(sim_matrix, sim_matrix)

    # Each partial tile sums back to its block's diagonal -logpt sum; mean over N rows.
    return jnp.sum(partials) / jnp.float32(n)


def cross_en_ref(sim_matrix: jax.Array) -> jax.Array:
    """Pure-JAX reference mirroring the PyTorch forward."""
    logpt = jax.nn.log_softmax(sim_matrix.astype(jnp.float32), axis=-1)
    return jnp.mean(-jnp.diagonal(logpt))


if __name__ == "__main__":
    key = jax.random.PRNGKey(0)
    k1, k2, k3 = jax.random.split(key, 3)

    # Case 1: tiny square similarity matrix (batch of 8 text/video pairs), f32, one block.
    sim8 = jax.random.normal(k1, (8, 8), dtype=jnp.float32)
    out1 = jax.block_until_ready(cross_en(sim8))
    ref1 = cross_en_ref(sim8)
    assert jnp.allclose(out1, ref1, atol=1e-5, rtol=1e-5), (out1, ref1)

    # Case 2: non-divisible N with forced row tiling -> multi-block grid + tail-row mask.
    sim200 = jax.random.normal(k2, (200, 200), dtype=jnp.float32) * 3.0
    out2 = jax.block_until_ready(cross_en(sim200, block_rows=128))
    ref2 = cross_en_ref(sim200)
    assert jnp.allclose(out2, ref2, atol=1e-5, rtol=1e-5), (out2, ref2)

    # Case 3: bf16 similarity matrix in HBM (bandwidth-bound path), f32 math in-kernel.
    sim_bf16 = jax.random.normal(k3, (128, 128), dtype=jnp.float32).astype(jnp.bfloat16)
    out3 = jax.block_until_ready(cross_en(sim_bf16))
    ref3 = cross_en_ref(sim_bf16)
    assert jnp.allclose(out3, ref3, atol=1e-4, rtol=1e-4), (out3, ref3)

    print("KERNEL_OK")
</pallas_src>

<mosaic_0001>
module attributes {stable_mosaic.version = 11 : i64} {
  func.func @_crossen_kernel(%arg0: i32, %arg1: memref<8x8xf32, #tpu.memory_space<vmem>>, %arg2: memref<8x8xf32, #tpu.memory_space<vmem>>, %arg3: memref<8x128xf32, #tpu.memory_space<vmem>>) attributes {dimension_semantics = [#tpu.dimension_semantics<parallel>], iteration_bounds = array<i64: 1>, scalar_prefetch = 0 : i64, scratch_operands = 0 : i64, tpu.core_type = #tpu.core_type<tc>, window_params = [{transform_indices = @transform_0, window_bounds = array<i64: 8, 8>}, {transform_indices = @transform_1, window_bounds = array<i64: 8, 8>}, {transform_indices = @transform_2, window_bounds = array<i64: 8, 128>}]} {
    %c0 = arith.constant 0 : index
    %c0_0 = arith.constant 0 : index
    %0 = vector.load %arg1[%c0, %c0_0] : memref<8x8xf32, #tpu.memory_space<vmem>>, vector<8x8xf32>
    %cst = arith.constant dense<0xFF800000> : vector<8xf32>
    %1 = vector.multi_reduction <maximumf>, %0, %cst [1] : vector<8x8xf32> to vector<8xf32>
    %2 = vector.shape_cast %1 : vector<8xf32> to vector<8x1xf32>
    %3 = vector.broadcast %2 : vector<8x1xf32> to vector<8x8xf32>
    %4 = arith.subf %0, %3 : vector<8x8xf32>
    %5 = math.exp %4 : vector<8x8xf32>
    %cst_1 = arith.constant dense<0.000000e+00> : vector<8xf32>
    %6 = vector.multi_reduction <add>, %5, %cst_1 [1] : vector<8x8xf32> to vector<8xf32>
    %7 = vector.shape_cast %6 : vector<8xf32> to vector<8x1xf32>
    %8 = math.log %7 : vector<8x1xf32>
    %c0_2 = arith.constant 0 : index
    %c0_3 = arith.constant 0 : index
    %9 = vector.load %arg2[%c0_2, %c0_3] : memref<8x8xf32, #tpu.memory_space<vmem>>, vector<8x8xf32>
    %10 = tpu.iota {dimensions = array<i32: 0>} : vector<8x8xi32>
    %11 = tpu.iota {dimensions = array<i32: 1>} : vector<8x8xi32>
    %12 = arith.cmpi eq, %10, %11 : vector<8x8xi32>
    %cst_4 = arith.constant 0.000000e+00 : f32
    %13 = vector.broadcast %cst_4 : f32 to vector<8x8xf32>
    %14 = arith.select %12, %9, %13 : vector<8x8xi1>, vector<8x8xf32>
    %cst_5 = arith.constant dense<0.000000e+00> : vector<8xf32>
    %15 = vector.multi_reduction <add>, %14, %cst_5 [1] : vector<8x8xf32> to vector<8xf32>
    %16 = vector.shape_cast %15 : vector<8xf32> to vector<8x1xf32>
    %17 = arith.addf %2, %8 : vector<8x1xf32>
    %18 = arith.subf %17, %16 : vector<8x1xf32>
    %c8_i32 = arith.constant 8 : i32
    %19 = arith.muli %arg0, %c8_i32 : i32
    %20 = tpu.iota {dimensions = array<i32: 0>} : vector<8x1xi32>
    %21 = vector.broadcast %19 : i32 to vector<8x1xi32>
    %22 = arith.addi %21, %20 : vector<8x1xi32>
    %c8_i32_6 = arith.constant 8 : i32
    %23 = vector.broadcast %c8_i32_6 : i32 to vector<8x1xi32>
    %24 = arith.cmpi slt, %22, %23 : vector<8x1xi32>
    %cst_7 = arith.constant 0.000000e+00 : f32
    %25 = vector.broadcast %cst_7 : f32 to vector<8x1xf32>
    %26 = arith.select %24, %18, %25 : vector<8x1xi1>, vector<8x1xf32>
    %27 = vector.shape_cast %26 : vector<8x1xf32> to vector<1x8x1xf32>
    %cst_8 = arith.constant dense<0.000000e+00> : vector<1xf32>
    %28 = vector.multi_reduction <add>, %27, %cst_8 [1, 2] : vector<1x8x1xf32> to vector<1xf32>
    %29 = vector.shape_cast %28 : vector<1xf32> to vector<1x1x1xf32>
    %30 = vector.extract %29[0, 0, 0] : f32 from vector<1x1x1xf32>
    %cst_9 = arith.constant 9.765625E-4 : f32
    %31 = arith.mulf %30, %cst_9 : f32
    %32 = vector.broadcast %31 : f32 to vector<8x128xf32>
    %c0_10 = arith.constant 0 : index
    %c0_11 = arith.constant 0 : index
    %33 = vector.load %arg3[%c0_10, %c0_11] : memref<8x128xf32, #tpu.memory_space<vmem>>, vector<8x128xf32>
    tpu.vector_store %arg3[%c0_10, %c0_11], %32 {strides = array<i32>} : memref<8x128xf32, #tpu.memory_space<vmem>>, vector<8x128xf32>,
    return
  }
  func.func @transform_0(%arg0: i32) -> (i32, i32) {
    %c0_i32 = arith.constant 0 : i32
    %c0_i32_0 = arith.constant 0 : i32
    return %arg0, %c0_i32 : i32, i32
  }
  func.func @transform_1(%arg0: i32) -> (i32, i32) {
    %c0_i32 = arith.constant 0 : i32
    return %arg0, %arg0 : i32, i32
  }
  func.func @transform_2(%arg0: i32) -> (i32, i32) {
    %c0_i32 = arith.constant 0 : i32
    %c0_i32_0 = arith.constant 0 : i32
    return %arg0, %c0_i32 : i32, i32
  }
}

</mosaic_0001>

<llo_original>
// kernel: tpu_custom_call.1
$region0: #{tpu_custom_call.1}
  #allocation0 [shape = 'u32[]', space=smem, size = 0x4, offset = 0x4, fixed_abs, tag = 'smem constant byte address 0x4 - core index']
  #allocation1 [shape = 'u32[144,128]{1,0:T(1,128)}', space=vmem, size = 0x12000, scoped, tag = 'internal scratch']
  %s0 = inlined_call_operand.hbm [shape: f32[8,8], index: 0, kind: input, shape index: {}]
  %s1 = inlined_call_operand.hbm [shape: f32[8,8], index: 1, kind: input, shape index: {}]
  %s2 = inlined_call_operand.hbm [shape: f32[8,128], index: 2, kind: output, shape index: {}]
  %s3 = sld [smem:[#allocation0]]
  $region26: #{tpu_custom_call.1} parent=0
    _
  %s5 = ssub.s32 1, %s3
  %s6 = scalar_select 0, %s5, %s3
  $region1: #{tpu_custom_call.1} parent=0
    #allocation2 [shape = 'u8[4096]{0}', space=vmem, size = 0x1000, scoped, tag = 'input window, operand 0, single buffered']
    #allocation3 [shape = 's32[1]{0}', space=sflag, size = 0x4, scoped, tag = 'scoped memory for tpu_custom_call.1']
    #allocation4 [shape = 's32[1]{0}', space=sflag, size = 0x4, scoped, tag = 'scoped memory for tpu_custom_call.1']
    #allocation5 [shape = 'u8[4096]{0}', space=vmem, size = 0x1000, scoped, tag = 'input window, operand 1, single buffered']
    #allocation6 [shape = 's32[1]{0}', space=sflag, size = 0x4, scoped, tag = 'scoped memory for tpu_custom_call.1']
    #allocation7 [shape = 'u8[4096]{0}', space=vmem, size = 0x1000, scoped, tag = 'output window, operand 0, single buffered']
    %7 = vsyncpa [#allocation3], 0
    %8 = vsyncpa [#allocation6], 0
    %9 = vsyncpa [#allocation4], 0
    // Predicated region
    $region2: #{tpu_custom_call.1} parent=1 // pred_check
      _
    $region3: #{tpu_custom_call.1} parent=1 // pred_check_branch
      %11 = sbr.rel (0) target = $region5
    $region4: #{tpu_custom_call.1} parent=1 // pred_region
      %s13 = ssub.s32 128, 128
      %14 = vsyncadd [#allocation3], %s13
      %s16 = sshll.u32 [#allocation2], 4
      %s17 = int_to_ptr.vmem [resolvable:$true] %s16
      %19 = dma.hbm_to_vmem [thread:$0]  %s0, 128, %s17, [#allocation3]
    $region5: #{tpu_custom_call.1} parent=1 // pred_fallthru
      _
    // Predicated region
    $region6: #{tpu_custom_call.1} parent=1 // pred_check
      _
    $region7: #{tpu_custom_call.1} parent=1 // pred_check_branch
      %21 = sbr.rel (0) target = $region9
    $region8: #{tpu_custom_call.1} parent=1 // pred_region
      %s23 = ssub.s32 128, 128
      %24 = vsyncadd [#allocation6], %s23
      %s26 = sshll.u32 [#allocation5], 4
      %s27 = int_to_ptr.vmem [resolvable:$true] %s26
      %29 = dma.hbm_to_vmem [thread:$0]  %s1, 128, %s27, [#allocation6]
    $region9: #{tpu_custom_call.1} parent=1 // pred_fallthru
      _
    // Predicated region
    $region10: #{tpu_custom_call.1} parent=1 // pred_check
      _
    $region11: #{tpu_custom_call.1} parent=1 // pred_check_branch
      %31 = sbr.rel (0) target = $region13
    $region12: #{tpu_custom_call.1} parent=1 // pred_region
      %32 = dma.done [#allocation3], 128
    $region13: #{tpu_custom_call.1} parent=1 // pred_fallthru
      _
    // Predicated region
    $region14: #{tpu_custom_call.1} parent=1 // pred_check
      _
    $region15: #{tpu_custom_call.1} parent=1 // pred_check_branch
      %34 = sbr.rel (0) target = $region17
    $region16: #{tpu_custom_call.1} parent=1 // pred_region
      %35 = dma.done [#allocation6], 128
    $region17: #{tpu_custom_call.1} parent=1 // pred_fallthru
      _
    %v36 = vld [vmem:[#allocation2] sm:$0xff]
    %vm37 = vcmask 64512
    %v38 = vsel %vm37, %v36, -inf
    %39 = vmax.xlane.f32.xlu0 %v38
    %v40 = vpop.xlane.xlu0 %39
    %v41 = vsub.f32 %v36, %v40
    %v42 = vmul.f32 %v41, 1.442695
    %v43 = vpow.pop %v42
    %v44 = vsel %vm37, %v43, 0.0
    %45 = vadd.xlane.f32.xlu0 %v44
    %v46 = vpop.xlane.xlu0 %45
    %v47 = vlog2.pop %v46
    %v48 = vmul.f32 %v47, 0.6931472
    %v49 = vld [vmem:[#allocation5] sm:$0xff]
    %v50 = vlaneseq
    %v51 = vshrl.u32 %v50, 7
    %v52 = vlaneseq
    %v53 = vand.u32 %v52, 127
    %vm54 = vcmp.eq.s32.totalorder %v51, %v53
    %v55 = vsel %vm54, %v49, 0.0
    %v56 = vsel %vm37, %v55, 0.0
    %57 = vadd.xlane.f32.xlu0 %v56
    %v58 = vpop.xlane.xlu0 %57
    %v59 = vadd.f32 %v40, %v48
    %v60 = vsub.f32 %v59, %v58
    %s61 = smul.u32 0, 8
    %v62 = vstv %s61
    %v63 = vadd.s32 %v62, %v51
    %vm64 = vcmp.lt.s32.totalorder %v63, 8
    %v65 = vsel %vm64, %v60, 0.0
    %vm66 = vcmask 7168
    %v67 = vsel %vm66, %v65, 0.0
    %68 = vadd.xlane.f32.xlu0 %v67
    %v69 = vpop.xlane.xlu0 %68
    %v70 = vrot.slane %v69, 4
    %v71 = vadd.f32 %v69, %v70
    %v72 = vrot.slane %v71, 2
    %v73 = vadd.f32 %v71, %v72
    %v74 = vrot.slane %v73, 1
    %v75 = vadd.f32 %v73, %v74
    %s76 = vtos %v75
    %s77 = smul.f32 %s76, 0.0009765625
    %v78 = vstv %s77
    %79 = vst [vmem:[#allocation7] sm:$0xff] %v78
    // Predicated region
    $region18: #{tpu_custom_call.1} parent=1 // pred_check
      _
    $region19: #{tpu_custom_call.1} parent=1 // pred_check_branch
      %81 = sbr.rel (0) target = $region21
    $region20: #{tpu_custom_call.1} parent=1 // pred_region
      %s83 = ssub.s32 128, 128
      %84 = vsyncadd [#allocation4], %s83
      %s86 = sshll.u32 [#allocation7], 4
      %s87 = int_to_ptr.vmem [resolvable:$true] %s86
      %89 = dma.vmem_to_hbm [thread:$0]  %s87, 128, %s2, [#allocation4]
    $region21: #{tpu_custom_call.1} parent=1 // pred_fallthru
      _
    // Predicated region
    $region22: #{tpu_custom_call.1} parent=1 // pred_check
      _
    $region23: #{tpu_custom_call.1} parent=1 // pred_check_branch
      %91 = sbr.rel (0) target = $region25
    $region24: #{tpu_custom_call.1} parent=1 // pred_region
      %92 = dma.done [#allocation4], 128
    $region25: #{tpu_custom_call.1} parent=1 // pred_fallthru
      _
    %93 = vsyncpa [#allocation3], 1
    %94 = vsyncpa [#allocation6], 1
    %95 = vsyncpa [#allocation4], 1

</llo_original>
